<compile_context>
chip_gen: v6e
topology: v6e:2x2x1
jax: 0.10.0
libtpu: 0.0.40
codegen_flags: <defaults>
</compile_context>

<pallas_src>
import jax
import jax.numpy as jnp
from jax.experimental import pallas as pl
from jax.experimental.pallas import tpu as pltpu


# ---------------------------------------------------------------------------
# Kernel 1: embedding bag (gather `context` rows from HBM, sum -> (1, E)).
# ---------------------------------------------------------------------------
def _embed_bag_kernel(idx_ref,     # SMEM (context,) int32 : context word ids
                      table_hbm,   # ANY  (V, E)           : embedding table (HBM)
                      out_ref,     # VMEM (1, E) f32       : sum of gathered rows
                      rows_vmem,   # VMEM (context, E)     : gathered rows scratch
                      sems):       # DMA semaphores (context,)
    context = idx_ref.shape[0]

    # Issue all row DMAs first, then wait (copies proceed concurrently).
    copies = []
    for c in range(context):                        # static -> fully unrolled
        cp = pltpu.make_async_copy(
            table_hbm.at[pl.ds(idx_ref[c], 1), :],  # one (1, E) row, dynamic start
            rows_vmem.at[pl.ds(c, 1), :],
            sems.at[c])
        cp.start()
        copies.append(cp)
    for cp in copies:
        cp.wait()

    # Contiguous (context, E) slab + one sublane reduce (XLU), f32 accumulate.
    out_ref[...] = jnp.sum(rows_vmem[...].astype(jnp.float32),
                           axis=0, keepdims=True)


# ---------------------------------------------------------------------------
# Kernel 2: V-tiled GEMV  (1, E) @ (E, TN) + (1, TN) -> (1, TN).
# ---------------------------------------------------------------------------
def _gemv_kernel(vec_ref, wt_ref, b_ref, out_ref):
    logits = jnp.dot(vec_ref[...], wt_ref[...],
                     preferred_element_type=jnp.float32)
    out_ref[...] = (logits + b_ref[...].astype(jnp.float32)).astype(out_ref.dtype)


def _pick_tile_n(V, E, itemsize, vmem_budget_bytes=2 << 20):
    """Largest power-of-two multiple of 128 dividing V that (a) leaves >= 2
    tiles (DMA/compute overlap; both v7x TensorCores get work) and (b) keeps
    one (E, TN) weight tile under ~2 MiB (double-buffered ~4 MiB, safely
    inside the scoped-VMEM defaults on v5e/v6e/v7x)."""
    if V % 128 != 0:
        return V                        # tiny/odd vocab: single full-width tile
    tn = 128
    cand = 256
    while (cand <= V // 2 and V % cand == 0
           and cand * E * itemsize <= vmem_budget_bytes):
        tn = cand
        cand *= 2
    return tn


@jax.jit
def cbow_forward(indices, emb_table, w1, b1):
    """indices: (context,) int; emb_table: (V, E); w1: (V, E); b1: (V,)."""
    V, E = emb_table.shape
    context = indices.shape[0]

    # Clamp: an out-of-range index would otherwise become an unchecked dynamic
    # HBM DMA (garbage read or fault under TPU OOB semantics).
    idx = jnp.clip(indices.astype(jnp.int32), 0, V - 1)

    # ---- 1) embedding bag -> (1, E) f32 -------------------------------------
    embeds = pl.pallas_call(
        _embed_bag_kernel,
        out_shape=jax.ShapeDtypeStruct((1, E), jnp.float32),
        in_specs=[
            pl.BlockSpec(memory_space=pltpu.MemorySpace.SMEM),   # indices
            pl.BlockSpec(memory_space=pl.ANY),                   # table stays in HBM
        ],
        out_specs=pl.BlockSpec(memory_space=pltpu.MemorySpace.VMEM),
        scratch_shapes=[
            pltpu.VMEM((context, E), emb_table.dtype),
            pltpu.SemaphoreType.DMA((context,)),
        ],
    )(idx, emb_table)

    # ---- 2) tiled GEMV over V ------------------------------------------------
    # Pre-orient W1 as (E, V) so each (E, TN) tile feeds the MXU with the
    # standard ((1,),(0,)) contraction (no per-tile transpose on the XLU).
    # TODO(synk): in a real deployment store W1 transposed to skip this copy.
    w1_t = jnp.transpose(w1)             # (E, V)
    b1_row = jnp.reshape(b1, (1, V))

    tn = _pick_tile_n(V, E, jnp.dtype(w1.dtype).itemsize)
    num_tiles = V // tn

    out = pl.pallas_call(
        _gemv_kernel,
        out_shape=jax.ShapeDtypeStruct((1, V), jnp.float32),
        grid=(num_tiles,),
        in_specs=[
            pl.BlockSpec((1, E), lambda j: (0, 0)),    # resident (1, E) vector
            pl.BlockSpec((E, tn), lambda j: (0, j)),   # streamed weight tile
            pl.BlockSpec((1, tn), lambda j: (0, j)),   # bias tile
        ],
        out_specs=pl.BlockSpec((1, tn), lambda j: (0, j)),
        compiler_params=pltpu.CompilerParams(
            # Independent V tiles: lets v7x's two TensorCores each stream half
            # of W; harmless on single-core v5e/v6e.
            dimension_semantics=("parallel",),
        ),
    )(embeds, w1_t, b1_row)
    return out


if __name__ == "__main__":
    vocab_size = 1024
    embed_size = 128
    context = 8

    key = jax.random.PRNGKey(0)
    k_emb, k_w, k_b, k_idx = jax.random.split(key, 4)

    # nn.Embedding default init: N(0, 1).
    emb_table = jax.random.normal(k_emb, (vocab_size, embed_size), jnp.float32)
    # nn.Linear default init: U(-1/sqrt(in_features), +1/sqrt(in_features)).
    bound = 1.0 / (embed_size ** 0.5)
    w1 = jax.random.uniform(k_w, (vocab_size, embed_size), jnp.float32,
                            minval=-bound, maxval=bound)
    b1 = jax.random.uniform(k_b, (vocab_size,), jnp.float32,
                            minval=-bound, maxval=bound)

    # Context word indices (the module's `inputs`).
    indices = jax.random.randint(k_idx, (context,), 0, vocab_size, jnp.int32)

    out = cbow_forward(indices, emb_table, w1, b1)
    out = jax.block_until_ready(out)

    # Pure-JAX reference (full-precision f32 matmul).  The kernel's MXU matmul
    # may use the default multi-pass bf16 f32 algorithm, so tolerance is set
    # accordingly.
    embeds_ref = emb_table[indices].sum(axis=0).reshape(1, -1)
    ref = jnp.matmul(embeds_ref, w1.T,
                     precision=jax.lax.Precision.HIGHEST) + b1.reshape(1, -1)

    assert out.shape == (1, vocab_size)
    assert jnp.allclose(out, ref, atol=2e-2, rtol=2e-2), "mismatch vs reference"

    print("KERNEL_OK")
</pallas_src>

<mosaic_0001>
module attributes {stable_mosaic.version = 11 : i64} {
  func.func @_gemv_kernel(%arg0: i32, %arg1: memref<1x128xf32, #tpu.memory_space<vmem>>, %arg2: memref<128x512xf32, #tpu.memory_space<vmem>>, %arg3: memref<1x512xf32, #tpu.memory_space<vmem>>, %arg4: memref<1x512xf32, #tpu.memory_space<vmem>>) attributes {dimension_semantics = [#tpu.dimension_semantics<parallel>], iteration_bounds = array<i64: 2>, scalar_prefetch = 0 : i64, scratch_operands = 0 : i64, tpu.core_type = #tpu.core_type<tc>, window_params = [{pipeline_mode = #tpu.pipeline_mode<synchronous>, transform_indices = @transform_0, window_bounds = array<i64: 1, 128>}, {transform_indices = @transform_1, window_bounds = array<i64: 128, 512>}, {transform_indices = @transform_2, window_bounds = array<i64: 1, 512>}, {transform_indices = @transform_3, window_bounds = array<i64: 1, 512>}]} {
    %c0 = arith.constant 0 : index
    %c0_0 = arith.constant 0 : index
    %0 = vector.load %arg1[%c0, %c0_0] : memref<1x128xf32, #tpu.memory_space<vmem>>, vector<1x128xf32>
    %c0_1 = arith.constant 0 : index
    %c0_2 = arith.constant 0 : index
    %1 = vector.load %arg2[%c0_1, %c0_2] : memref<128x512xf32, #tpu.memory_space<vmem>>, vector<128x512xf32>
    %cst = arith.constant dense<0.000000e+00> : vector<1x512xf32>
    %2 = tpu.matmul %0, %1, %cst {dimension_numbers = #tpu.dot_dimension_numbers<[1], [0], [0], [1], [0, 0, 1, 1], [], []>} : vector<1x128xf32>, vector<128x512xf32>, vector<1x512xf32> -> vector<1x512xf32>
    %c0_3 = arith.constant 0 : index
    %c0_4 = arith.constant 0 : index
    %3 = vector.load %arg3[%c0_3, %c0_4] : memref<1x512xf32, #tpu.memory_space<vmem>>, vector<1x512xf32>
    %4 = arith.addf %2, %3 : vector<1x512xf32>
    %c0_5 = arith.constant 0 : index
    %c0_6 = arith.constant 0 : index
    %5 = vector.load %arg4[%c0_5, %c0_6] : memref<1x512xf32, #tpu.memory_space<vmem>>, vector<1x512xf32>
    tpu.vector_store %arg4[%c0_5, %c0_6], %4 {strides = array<i32>} : memref<1x512xf32, #tpu.memory_space<vmem>>, vector<1x512xf32>,
    return
  }
  func.func @transform_0(%arg0: i32) -> (i32, i32) {
    %c0_i32 = arith.constant 0 : i32
    %c0_i32_0 = arith.constant 0 : i32
    %c0_i32_1 = arith.constant 0 : i32
    return %c0_i32, %c0_i32_0 : i32, i32
  }
  func.func @transform_1(%arg0: i32) -> (i32, i32) {
    %c0_i32 = arith.constant 0 : i32
    %c0_i32_0 = arith.constant 0 : i32
    return %c0_i32, %arg0 : i32, i32
  }
  func.func @transform_2(%arg0: i32) -> (i32, i32) {
    %c0_i32 = arith.constant 0 : i32
    %c0_i32_0 = arith.constant 0 : i32
    return %c0_i32, %arg0 : i32, i32
  }
  func.func @transform_3(%arg0: i32) -> (i32, i32) {
    %c0_i32 = arith.constant 0 : i32
    %c0_i32_0 = arith.constant 0 : i32
    return %c0_i32, %arg0 : i32, i32
  }
}

module attributes {stable_mosaic.version = 11 : i64} {
  func.func @_embed_bag_kernel(%arg0: memref<8xi32, #tpu.memory_space<smem>>, %arg1: memref<1024x128xf32, #tpu.memory_space<any>>, %arg2: memref<1x128xf32, #tpu.memory_space<vmem>>, %arg3: memref<8x128xf32, #tpu.memory_space<vmem>>, %arg4: memref<8x!tpu.dma_semaphore, #tpu.memory_space<semaphore_mem>>) attributes {dimension_semantics = [], scalar_prefetch = 0 : i64, scratch_operands = 2 : i64, tpu.core_type = #tpu.core_type<tc>} {
    %c0 = arith.constant 0 : index
    %0 = memref.load %arg0[%c0] : memref<8xi32, #tpu.memory_space<smem>>
    %c0_i32 = arith.constant 0 : i32
    %c0_i32_0 = arith.constant 0 : i32
    %1 = tpu.memref_slice %arg1[%0, %c0_i32_0] : memref<1024x128xf32, #tpu.memory_space<any>> -> memref<1x128xf32, #tpu.memory_space<any>>
    %c0_i32_1 = arith.constant 0 : i32
    %c0_i32_2 = arith.constant 0 : i32
    %2 = tpu.memref_slice %arg3[%c0_i32_1, %c0_i32_2] : memref<8x128xf32, #tpu.memory_space<vmem>> -> memref<1x128xf32, #tpu.memory_space<vmem>>
    %3 = tpu.memref_slice %arg4[%c0_i32] : memref<8x!tpu.dma_semaphore, #tpu.memory_space<semaphore_mem>> -> memref<1x!tpu.dma_semaphore, #tpu.memory_space<semaphore_mem>>
    %4 = tpu.memref_squeeze %3 : memref<1x!tpu.dma_semaphore, #tpu.memory_space<semaphore_mem>> -> memref<!tpu.dma_semaphore, #tpu.memory_space<semaphore_mem>>
    tpu.enqueue_dma source(%1 : memref<1x128xf32, #tpu.memory_space<any>>) target(%2 : memref<1x128xf32, #tpu.memory_space<vmem>>) target_semaphore(%4 : memref<!tpu.dma_semaphore, #tpu.memory_space<semaphore_mem>>)
    %c1 = arith.constant 1 : index
    %5 = memref.load %arg0[%c1] : memref<8xi32, #tpu.memory_space<smem>>
    %c1_i32 = arith.constant 1 : i32
    %c0_i32_3 = arith.constant 0 : i32
    %6 = tpu.memref_slice %arg1[%5, %c0_i32_3] : memref<1024x128xf32, #tpu.memory_space<any>> -> memref<1x128xf32, #tpu.memory_space<any>>
    %c1_i32_4 = arith.constant 1 : i32
    %c0_i32_5 = arith.constant 0 : i32
    %7 = tpu.memref_slice %arg3[%c1_i32_4, %c0_i32_5] : memref<8x128xf32, #tpu.memory_space<vmem>> -> memref<1x128xf32, #tpu.memory_space<vmem>>
    %8 = tpu.memref_slice %arg4[%c1_i32] : memref<8x!tpu.dma_semaphore, #tpu.memory_space<semaphore_mem>> -> memref<1x!tpu.dma_semaphore, #tpu.memory_space<semaphore_mem>>
    %9 = tpu.memref_squeeze %8 : memref<1x!tpu.dma_semaphore, #tpu.memory_space<semaphore_mem>> -> memref<!tpu.dma_semaphore, #tpu.memory_space<semaphore_mem>>
    tpu.enqueue_dma source(%6 : memref<1x128xf32, #tpu.memory_space<any>>) target(%7 : memref<1x128xf32, #tpu.memory_space<vmem>>) target_semaphore(%9 : memref<!tpu.dma_semaphore, #tpu.memory_space<semaphore_mem>>)
    %c2 = arith.constant 2 : index
    %10 = memref.load %arg0[%c2] : memref<8xi32, #tpu.memory_space<smem>>
    %c2_i32 = arith.constant 2 : i32
    %c0_i32_6 = arith.constant 0 : i32
    %11 = tpu.memref_slice %arg1[%10, %c0_i32_6] : memref<1024x128xf32, #tpu.memory_space<any>> -> memref<1x128xf32, #tpu.memory_space<any>>
    %c2_i32_7 = arith.constant 2 : i32
    %c0_i32_8 = arith.constant 0 : i32
    %12 = tpu.memref_slice %arg3[%c2_i32_7, %c0_i32_8] : memref<8x128xf32, #tpu.memory_space<vmem>> -> memref<1x128xf32, #tpu.memory_space<vmem>>
    %13 = tpu.memref_slice %arg4[%c2_i32] : memref<8x!tpu.dma_semaphore, #tpu.memory_space<semaphore_mem>> -> memref<1x!tpu.dma_semaphore, #tpu.memory_space<semaphore_mem>>
    %14 = tpu.memref_squeeze %13 : memref<1x!tpu.dma_semaphore, #tpu.memory_space<semaphore_mem>> -> memref<!tpu.dma_semaphore, #tpu.memory_space<semaphore_mem>>
    tpu.enqueue_dma source(%11 : memref<1x128xf32, #tpu.memory_space<any>>) target(%12 : memref<1x128xf32, #tpu.memory_space<vmem>>) target_semaphore(%14 : memref<!tpu.dma_semaphore, #tpu.memory_space<semaphore_mem>>)
    %c3 = arith.constant 3 : index
    %15 = memref.load %arg0[%c3] : memref<8xi32, #tpu.memory_space<smem>>
    %c3_i32 = arith.constant 3 : i32
    %c0_i32_9 = arith.constant 0 : i32
    %16 = tpu.memref_slice %arg1[%15, %c0_i32_9] : memref<1024x128xf32, #tpu.memory_space<any>> -> memref<1x128xf32, #tpu.memory_space<any>>
    %c3_i32_10 = arith.constant 3 : i32
    %c0_i32_11 = arith.constant 0 : i32
    %17 = tpu.memref_slice %arg3[%c3_i32_10, %c0_i32_11] : memref<8x128xf32, #tpu.memory_space<vmem>> -> memref<1x128xf32, #tpu.memory_space<vmem>>
    %18 = tpu.memref_slice %arg4[%c3_i32] : memref<8x!tpu.dma_semaphore, #tpu.memory_space<semaphore_mem>> -> memref<1x!tpu.dma_semaphore, #tpu.memory_space<semaphore_mem>>
    %19 = tpu.memref_squeeze %18 : memref<1x!tpu.dma_semaphore, #tpu.memory_space<semaphore_mem>> -> memref<!tpu.dma_semaphore, #tpu.memory_space<semaphore_mem>>
    tpu.enqueue_dma source(%16 : memref<1x128xf32, #tpu.memory_space<any>>) target(%17 : memref<1x128xf32, #tpu.memory_space<vmem>>) target_semaphore(%19 : memref<!tpu.dma_semaphore, #tpu.memory_space<semaphore_mem>>)
    %c4 = arith.constant 4 : index
    %20 = memref.load %arg0[%c4] : memref<8xi32, #tpu.memory_space<smem>>
    %c4_i32 = arith.constant 4 : i32
    %c0_i32_12 = arith.constant 0 : i32
    %21 = tpu.memref_slice %arg1[%20, %c0_i32_12] : memref<1024x128xf32, #tpu.memory_space<any>> -> memref<1x128xf32, #tpu.memory_space<any>>
    %c4_i32_13 = arith.constant 4 : i32
    %c0_i32_14 = arith.constant 0 : i32
    %22 = tpu.memref_slice %arg3[%c4_i32_13, %c0_i32_14] : memref<8x128xf32, #tpu.memory_space<vmem>> -> memref<1x128xf32, #tpu.memory_space<vmem>>
    %23 = tpu.memref_slice %arg4[%c4_i32] : memref<8x!tpu.dma_semaphore, #tpu.memory_space<semaphore_mem>> -> memref<1x!tpu.dma_semaphore, #tpu.memory_space<semaphore_mem>>
    %24 = tpu.memref_squeeze %23 : memref<1x!tpu.dma_semaphore, #tpu.memory_space<semaphore_mem>> -> memref<!tpu.dma_semaphore, #tpu.memory_space<semaphore_mem>>
    tpu.enqueue_dma source(%21 : memref<1x128xf32, #tpu.memory_space<any>>) target(%22 : memref<1x128xf32, #tpu.memory_space<vmem>>) target_semaphore(%24 : memref<!tpu.dma_semaphore, #tpu.memory_space<semaphore_mem>>)
    %c5 = arith.constant 5 : index
    %25 = memref.load %arg0[%c5] : memref<8xi32, #tpu.memory_space<smem>>
    %c5_i32 = arith.constant 5 : i32
    %c0_i32_15 = arith.constant 0 : i32
    %26 = tpu.memref_slice %arg1[%25, %c0_i32_15] : memref<1024x128xf32, #tpu.memory_space<any>> -> memref<1x128xf32, #tpu.memory_space<any>>
    %c5_i32_16 = arith.constant 5 : i32
    %c0_i32_17 = arith.constant 0 : i32
    %27 = tpu.memref_slice %arg3[%c5_i32_16, %c0_i32_17] : memref<8x128xf32, #tpu.memory_space<vmem>> -> memref<1x128xf32, #tpu.memory_space<vmem>>
    %28 = tpu.memref_slice %arg4[%c5_i32] : memref<8x!tpu.dma_semaphore, #tpu.memory_space<semaphore_mem>> -> memref<1x!tpu.dma_semaphore, #tpu.memory_space<semaphore_mem>>
    %29 = tpu.memref_squeeze %28 : memref<1x!tpu.dma_semaphore, #tpu.memory_space<semaphore_mem>> -> memref<!tpu.dma_semaphore, #tpu.memory_space<semaphore_mem>>
    tpu.enqueue_dma source(%26 : memref<1x128xf32, #tpu.memory_space<any>>) target(%27 : memref<1x128xf32, #tpu.memory_space<vmem>>) target_semaphore(%29 : memref<!tpu.dma_semaphore, #tpu.memory_space<semaphore_mem>>)
    %c6 = arith.constant 6 : index
    %30 = memref.load %arg0[%c6] : memref<8xi32, #tpu.memory_space<smem>>
    %c6_i32 = arith.constant 6 : i32
    %c0_i32_18 = arith.constant 0 : i32
    %31 = tpu.memref_slice %arg1[%30, %c0_i32_18] : memref<1024x128xf32, #tpu.memory_space<any>> -> memref<1x128xf32, #tpu.memory_space<any>>
    %c6_i32_19 = arith.constant 6 : i32
    %c0_i32_20 = arith.constant 0 : i32
    %32 = tpu.memref_slice %arg3[%c6_i32_19, %c0_i32_20] : memref<8x128xf32, #tpu.memory_space<vmem>> -> memref<1x128xf32, #tpu.memory_space<vmem>>
    %33 = tpu.memref_slice %arg4[%c6_i32] : memref<8x!tpu.dma_semaphore, #tpu.memory_space<semaphore_mem>> -> memref<1x!tpu.dma_semaphore, #tpu.memory_space<semaphore_mem>>
    %34 = tpu.memref_squeeze %33 : memref<1x!tpu.dma_semaphore, #tpu.memory_space<semaphore_mem>> -> memref<!tpu.dma_semaphore, #tpu.memory_space<semaphore_mem>>
    tpu.enqueue_dma source(%31 : memref<1x128xf32, #tpu.memory_space<any>>) target(%32 : memref<1x128xf32, #tpu.memory_space<vmem>>) target_semaphore(%34 : memref<!tpu.dma_semaphore, #tpu.memory_space<semaphore_mem>>)
    %c7 = arith.constant 7 : index
    %35 = memref.load %arg0[%c7] : memref<8xi32, #tpu.memory_space<smem>>
    %c7_i32 = arith.constant 7 : i32
    %c0_i32_21 = arith.constant 0 : i32
    %36 = tpu.memref_slice %arg1[%35, %c0_i32_21] : memref<1024x128xf32, #tpu.memory_space<any>> -> memref<1x128xf32, #tpu.memory_space<any>>
    %c7_i32_22 = arith.constant 7 : i32
    %c0_i32_23 = arith.constant 0 : i32
    %37 = tpu.memref_slice %arg3[%c7_i32_22, %c0_i32_23] : memref<8x128xf32, #tpu.memory_space<vmem>> -> memref<1x128xf32, #tpu.memory_space<vmem>>
    %38 = tpu.memref_slice %arg4[%c7_i32] : memref<8x!tpu.dma_semaphore, #tpu.memory_space<semaphore_mem>> -> memref<1x!tpu.dma_semaphore, #tpu.memory_space<semaphore_mem>>
    %39 = tpu.memref_squeeze %38 : memref<1x!tpu.dma_semaphore, #tpu.memory_space<semaphore_mem>> -> memref<!tpu.dma_semaphore, #tpu.memory_space<semaphore_mem>>
    tpu.enqueue_dma source(%36 : memref<1x128xf32, #tpu.memory_space<any>>) target(%37 : memref<1x128xf32, #tpu.memory_space<vmem>>) target_semaphore(%39 : memref<!tpu.dma_semaphore, #tpu.memory_space<semaphore_mem>>)
    %c0_i32_24 = arith.constant 0 : i32
    %c0_i32_25 = arith.constant 0 : i32
    %40 = tpu.memref_slice %arg1[%0, %c0_i32_25] : memref<1024x128xf32, #tpu.memory_space<any>> -> memref<1x128xf32, #tpu.memory_space<any>>
    %c0_i32_26 = arith.constant 0 : i32
    %c0_i32_27 = arith.constant 0 : i32
    %41 = tpu.memref_slice %arg3[%c0_i32_26, %c0_i32_27] : memref<8x128xf32, #tpu.memory_space<vmem>> -> memref<1x128xf32, #tpu.memory_space<vmem>>
    %42 = tpu.memref_slice %arg4[%c0_i32_24] : memref<8x!tpu.dma_semaphore, #tpu.memory_space<semaphore_mem>> -> memref<1x!tpu.dma_semaphore, #tpu.memory_space<semaphore_mem>>
    %43 = tpu.memref_squeeze %42 : memref<1x!tpu.dma_semaphore, #tpu.memory_space<semaphore_mem>> -> memref<!tpu.dma_semaphore, #tpu.memory_space<semaphore_mem>>
    tpu.wait_dma2 semaphore(%43 : memref<!tpu.dma_semaphore, #tpu.memory_space<semaphore_mem>>) src(%40 : memref<1x128xf32, #tpu.memory_space<any>>) dst(%41 : memref<1x128xf32, #tpu.memory_space<vmem>>)
    %c1_i32_28 = arith.constant 1 : i32
    %c0_i32_29 = arith.constant 0 : i32
    %44 = tpu.memref_slice %arg1[%5, %c0_i32_29] : memref<1024x128xf32, #tpu.memory_space<any>> -> memref<1x128xf32, #tpu.memory_space<any>>
    %c1_i32_30 = arith.constant 1 : i32
    %c0_i32_31 = arith.constant 0 : i32
    %45 = tpu.memref_slice %arg3[%c1_i32_30, %c0_i32_31] : memref<8x128xf32, #tpu.memory_space<vmem>> -> memref<1x128xf32, #tpu.memory_space<vmem>>
    %46 = tpu.memref_slice %arg4[%c1_i32_28] : memref<8x!tpu.dma_semaphore, #tpu.memory_space<semaphore_mem>> -> memref<1x!tpu.dma_semaphore, #tpu.memory_space<semaphore_mem>>
    %47 = tpu.memref_squeeze %46 : memref<1x!tpu.dma_semaphore, #tpu.memory_space<semaphore_mem>> -> memref<!tpu.dma_semaphore, #tpu.memory_space<semaphore_mem>>
    tpu.wait_dma2 semaphore(%47 : memref<!tpu.dma_semaphore, #tpu.memory_space<semaphore_mem>>) src(%44 : memref<1x128xf32, #tpu.memory_space<any>>) dst(%45 : memref<1x128xf32, #tpu.memory_space<vmem>>)
    %c2_i32_32 = arith.constant 2 : i32
    %c0_i32_33 = arith.constant 0 : i32
    %48 = tpu.memref_slice %arg1[%10, %c0_i32_33] : memref<1024x128xf32, #tpu.memory_space<any>> -> memref<1x128xf32, #tpu.memory_space<any>>
    %c2_i32_34 = arith.constant 2 : i32
    %c0_i32_35 = arith.constant 0 : i32
    %49 = tpu.memref_slice %arg3[%c2_i32_34, %c0_i32_35] : memref<8x128xf32, #tpu.memory_space<vmem>> -> memref<1x128xf32, #tpu.memory_space<vmem>>
    %50 = tpu.memref_slice %arg4[%c2_i32_32] : memref<8x!tpu.dma_semaphore, #tpu.memory_space<semaphore_mem>> -> memref<1x!tpu.dma_semaphore, #tpu.memory_space<semaphore_mem>>
    %51 = tpu.memref_squeeze %50 : memref<1x!tpu.dma_semaphore, #tpu.memory_space<semaphore_mem>> -> memref<!tpu.dma_semaphore, #tpu.memory_space<semaphore_mem>>
    tpu.wait_dma2 semaphore(%51 : memref<!tpu.dma_semaphore, #tpu.memory_space<semaphore_mem>>) src(%48 : memref<1x128xf32, #tpu.memory_space<any>>) dst(%49 : memref<1x128xf32, #tpu.memory_space<vmem>>)
    %c3_i32_36 = arith.constant 3 : i32
    %c0_i32_37 = arith.constant 0 : i32
    %52 = tpu.memref_slice %arg1[%15, %c0_i32_37] : memref<1024x128xf32, #tpu.memory_space<any>> -> memref<1x128xf32, #tpu.memory_space<any>>
    %c3_i32_38 = arith.constant 3 : i32
    %c0_i32_39 = arith.constant 0 : i32
    %53 = tpu.memref_slice %arg3[%c3_i32_38, %c0_i32_39] : memref<8x128xf32, #tpu.memory_space<vmem>> -> memref<1x128xf32, #tpu.memory_space<vmem>>
    %54 = tpu.memref_slice %arg4[%c3_i32_36] : memref<8x!tpu.dma_semaphore, #tpu.memory_space<semaphore_mem>> -> memref<1x!tpu.dma_semaphore, #tpu.memory_space<semaphore_mem>>
    %55 = tpu.memref_squeeze %54 : memref<1x!tpu.dma_semaphore, #tpu.memory_space<semaphore_mem>> -> memref<!tpu.dma_semaphore, #tpu.memory_space<semaphore_mem>>
    tpu.wait_dma2 semaphore(%55 : memref<!tpu.dma_semaphore, #tpu.memory_space<semaphore_mem>>) src(%52 : memref<1x128xf32, #tpu.memory_space<any>>) dst(%53 : memref<1x128xf32, #tpu.memory_space<vmem>>)
    %c4_i32_40 = arith.constant 4 : i32
    %c0_i32_41 = arith.constant 0 : i32
    %56 = tpu.memref_slice %arg1[%20, %c0_i32_41] : memref<1024x128xf32, #tpu.memory_space<any>> -> memref<1x128xf32, #tpu.memory_space<any>>
    %c4_i32_42 = arith.constant 4 : i32
    %c0_i32_43 = arith.constant 0 : i32
    %57 = tpu.memref_slice %arg3[%c4_i32_42, %c0_i32_43] : memref<8x128xf32, #tpu.memory_space<vmem>> -> memref<1x128xf32, #tpu.memory_space<vmem>>
    %58 = tpu.memref_slice %arg4[%c4_i32_40] : memref<8x!tpu.dma_semaphore, #tpu.memory_space<semaphore_mem>> -> memref<1x!tpu.dma_semaphore, #tpu.memory_space<semaphore_mem>>
    %59 = tpu.memref_squeeze %58 : memref<1x!tpu.dma_semaphore, #tpu.memory_space<semaphore_mem>> -> memref<!tpu.dma_semaphore, #tpu.memory_space<semaphore_mem>>
    tpu.wait_dma2 semaphore(%59 : memref<!tpu.dma_semaphore, #tpu.memory_space<semaphore_mem>>) src(%56 : memref<1x128xf32, #tpu.memory_space<any>>) dst(%57 : memref<1x128xf32, #tpu.memory_space<vmem>>)
    %c5_i32_44 = arith.constant 5 : i32
    %c0_i32_45 = arith.constant 0 : i32
    %60 = tpu.memref_slice %arg1[%25, %c0_i32_45] : memref<1024x128xf32, #tpu.memory_space<any>> -> memref<1x128xf32, #tpu.memory_space<any>>
    %c5_i32_46 = arith.constant 5 : i32
    %c0_i32_47 = arith.constant 0 : i32
    %61 = tpu.memref_slice %arg3[%c5_i32_46, %c0_i32_47] : memref<8x128xf32, #tpu.memory_space<vmem>> -> memref<1x128xf32, #tpu.memory_space<vmem>>
    %62 = tpu.memref_slice %arg4[%c5_i32_44] : memref<8x!tpu.dma_semaphore, #tpu.memory_space<semaphore_mem>> -> memref<1x!tpu.dma_semaphore, #tpu.memory_space<semaphore_mem>>
    %63 = tpu.memref_squeeze %62 : memref<1x!tpu.dma_semaphore, #tpu.memory_space<semaphore_mem>> -> memref<!tpu.dma_semaphore, #tpu.memory_space<semaphore_mem>>
    tpu.wait_dma2 semaphore(%63 : memref<!tpu.dma_semaphore, #tpu.memory_space<semaphore_mem>>) src(%60 : memref<1x128xf32, #tpu.memory_space<any>>) dst(%61 : memref<1x128xf32, #tpu.memory_space<vmem>>)
    %c6_i32_48 = arith.constant 6 : i32
    %c0_i32_49 = arith.constant 0 : i32
    %64 = tpu.memref_slice %arg1[%30, %c0_i32_49] : memref<1024x128xf32, #tpu.memory_space<any>> -> memref<1x128xf32, #tpu.memory_space<any>>
    %c6_i32_50 = arith.constant 6 : i32
    %c0_i32_51 = arith.constant 0 : i32
    %65 = tpu.memref_slice %arg3[%c6_i32_50, %c0_i32_51] : memref<8x128xf32, #tpu.memory_space<vmem>> -> memref<1x128xf32, #tpu.memory_space<vmem>>
    %66 = tpu.memref_slice %arg4[%c6_i32_48] : memref<8x!tpu.dma_semaphore, #tpu.memory_space<semaphore_mem>> -> memref<1x!tpu.dma_semaphore, #tpu.memory_space<semaphore_mem>>
    %67 = tpu.memref_squeeze %66 : memref<1x!tpu.dma_semaphore, #tpu.memory_space<semaphore_mem>> -> memref<!tpu.dma_semaphore, #tpu.memory_space<semaphore_mem>>
    tpu.wait_dma2 semaphore(%67 : memref<!tpu.dma_semaphore, #tpu.memory_space<semaphore_mem>>) src(%64 : memref<1x128xf32, #tpu.memory_space<any>>) dst(%65 : memref<1x128xf32, #tpu.memory_space<vmem>>)
    %c7_i32_52 = arith.constant 7 : i32
    %c0_i32_53 = arith.constant 0 : i32
    %68 = tpu.memref_slice %arg1[%35, %c0_i32_53] : memref<1024x128xf32, #tpu.memory_space<any>> -> memref<1x128xf32, #tpu.memory_space<any>>
    %c7_i32_54 = arith.constant 7 : i32
    %c0_i32_55 = arith.constant 0 : i32
    %69 = tpu.memref_slice %arg3[%c7_i32_54, %c0_i32_55] : memref<8x128xf32, #tpu.memory_space<vmem>> -> memref<1x128xf32, #tpu.memory_space<vmem>>
    %70 = tpu.memref_slice %arg4[%c7_i32_52] : memref<8x!tpu.dma_semaphore, #tpu.memory_space<semaphore_mem>> -> memref<1x!tpu.dma_semaphore, #tpu.memory_space<semaphore_mem>>
    %71 = tpu.memref_squeeze %70 : memref<1x!tpu.dma_semaphore, #tpu.memory_space<semaphore_mem>> -> memref<!tpu.dma_semaphore, #tpu.memory_space<semaphore_mem>>
    tpu.wait_dma2 semaphore(%71 : memref<!tpu.dma_semaphore, #tpu.memory_space<semaphore_mem>>) src(%68 : memref<1x128xf32, #tpu.memory_space<any>>) dst(%69 : memref<1x128xf32, #tpu.memory_space<vmem>>)
    %c0_56 = arith.constant 0 : index
    %c0_57 = arith.constant 0 : index
    %72 = vector.load %arg3[%c0_56, %c0_57] : memref<8x128xf32, #tpu.memory_space<vmem>>, vector<8x128xf32>
    %cst = arith.constant dense<0.000000e+00> : vector<128xf32>
    %73 = vector.multi_reduction <add>, %72, %cst [0] : vector<8x128xf32> to vector<128xf32>
    %74 = vector.shape_cast %73 : vector<128xf32> to vector<1x128xf32>
    %c0_58 = arith.constant 0 : index
    %c0_59 = arith.constant 0 : index
    %75 = vector.load %arg2[%c0_58, %c0_59] : memref<1x128xf32, #tpu.memory_space<vmem>>, vector<1x128xf32>
    tpu.vector_store %arg2[%c0_58, %c0_59], %74 {strides = array<i32>} : memref<1x128xf32, #tpu.memory_space<vmem>>, vector<1x128xf32>,
    return
  }
}

</mosaic_0001>

<llo_original>
// kernel: cbow_forward.2
$region0: #{cbow_forward.2}
  #allocation0 [shape = 'u32[]', space=smem, size = 0x4, offset = 0x4, fixed_abs, tag = 'smem constant byte address 0x4 - core index']
  #allocation1 [shape = 'u32[144,128]{1,0:T(1,128)}', space=vmem, size = 0x12000, scoped, tag = 'internal scratch']
  #allocation2 [shape = 'f32[8,128]{1,0:T(8,128)}', space=vmem, size = 0x1000, scoped, tag = 'scratch operand']
  #allocation3 [shape = 's32[8]{0}', space=sflag, size = 0x20, scoped, tag = 'scratch operand']
  #allocation6 [shape = 's32[]', space=sflag, size = 0x4, offset = 0, fixed_abs, tag = 'sflag constant byte address 0x0 - dummy sync flag']
  #allocation7 [shape = 's32[]', space=sflag, size = 0x4, offset = 0, fixed_abs, tag = 'sflag constant byte address 0x0 - dummy sync flag']
  #allocation8 [shape = 'u32[]', space=smem, size = 0x4, offset = 0x44, fixed_abs, tag = 'smem constant byte address 0x44 - assertion arg 0']
  #allocation9 [shape = 'u32[]', space=smem, size = 0x4, offset = 0x48, fixed_abs, tag = 'smem constant byte address 0x48 - assertion arg 1']
  #allocation10 [shape = 's32[]', space=sflag, size = 0x4, offset = 0, fixed_abs, tag = 'sflag constant byte address 0x0 - dummy sync flag']
  #allocation11 [shape = 's32[]', space=sflag, size = 0x4, offset = 0, fixed_abs, tag = 'sflag constant byte address 0x0 - dummy sync flag']
  #allocation12 [shape = 's32[]', space=sflag, size = 0x4, offset = 0, fixed_abs, tag = 'sflag constant byte address 0x0 - dummy sync flag']
  #allocation13 [shape = 's32[]', space=sflag, size = 0x4, offset = 0, fixed_abs, tag = 'sflag constant byte address 0x0 - dummy sync flag']
  #allocation14 [shape = 's32[]', space=sflag, size = 0x4, offset = 0, fixed_abs, tag = 'sflag constant byte address 0x0 - dummy sync flag']
  #allocation15 [shape = 's32[]', space=sflag, size = 0x4, offset = 0, fixed_abs, tag = 'sflag constant byte address 0x0 - dummy sync flag']
  #allocation16 [shape = 's32[]', space=sflag, size = 0x4, offset = 0, fixed_abs, tag = 'sflag constant byte address 0x0 - dummy sync flag']
  #allocation17 [shape = 's32[]', space=sflag, size = 0x4, offset = 0, fixed_abs, tag = 'sflag constant byte address 0x0 - dummy sync flag']
  #allocation18 [shape = 's32[]', space=sflag, size = 0x4, offset = 0, fixed_abs, tag = 'sflag constant byte address 0x0 - dummy sync flag']
  #allocation19 [shape = 's32[]', space=sflag, size = 0x4, offset = 0, fixed_abs, tag = 'sflag constant byte address 0x0 - dummy sync flag']
  #allocation20 [shape = 's32[]', space=sflag, size = 0x4, offset = 0, fixed_abs, tag = 'sflag constant byte address 0x0 - dummy sync flag']
  #allocation21 [shape = 's32[]', space=sflag, size = 0x4, offset = 0, fixed_abs, tag = 'sflag constant byte address 0x0 - dummy sync flag']
  #allocation22 [shape = 's32[]', space=sflag, size = 0x4, offset = 0, fixed_abs, tag = 'sflag constant byte address 0x0 - dummy sync flag']
  #allocation23 [shape = 's32[]', space=sflag, size = 0x4, offset = 0, fixed_abs, tag = 'sflag constant byte address 0x0 - dummy sync flag']
  %s0 = inlined_call_operand.vmem [shape: s32[8], index: 0, kind: input, shape index: {}]
  %s1 = inlined_call_operand.hbm [shape: f32[1024,128], index: 1, kind: input, shape index: {}]
  %s2 = inlined_call_operand.vmem [shape: f32[1,128], index: 2, kind: output, shape index: {}]
  %s3 = sld [smem:[#allocation0]]
  $region50: #{cbow_forward.2} parent=0
    _
  %s5 = ssub.s32 1, %s3
  %s6 = scalar_select 0, %s5, %s3
  $region1: #{cbow_forward.2} parent=0
    #allocation4 [shape = 'u8[512]{0}', space=smem, size = 0x200, scoped, tag = 'input window, operand 0, single buffered']
    #allocation5 [shape = 's32[1]{0}', space=sflag, size = 0x4, scoped, tag = 'scoped memory for cbow_forward.2']
    %7 = vsyncpa [#allocation5], 0
    // Predicated region
    $region2: #{cbow_forward.2} parent=1 // pred_check
      _
    $region3: #{cbow_forward.2} parent=1 // pred_check_branch
      %9 = sbr.rel (0) target = $region5
    $region4: #{cbow_forward.2} parent=1 // pred_region
      %s11 = ssub.s32 16, 16
      %12 = vsyncadd [#allocation5], %s11
      %s14 = sshll.u32 %s0, 4
      %s15 = int_to_ptr.vmem [resolvable:$true] %s14
      %17 = dma.vmem_to_smem %s15, 16, [#allocation4], [#allocation5]
    $region5: #{cbow_forward.2} parent=1 // pred_fallthru
      _
    // Predicated region
    $region6: #{cbow_forward.2} parent=1 // pred_check
      _
    $region7: #{cbow_forward.2} parent=1 // pred_check_branch
      %19 = sbr.rel (0) target = $region9
    $region8: #{cbow_forward.2} parent=1 // pred_region
      %20 = dma.done [#allocation5], 16
    $region9: #{cbow_forward.2} parent=1 // pred_fallthru
      _
    %21 = sfence
    %s22 = sld [smem:[#allocation4]]
    %s23 = smul.addr %s22, 16
    %s24 = scalar_lea.hbm %s1, %s23
    // Predicated region
    $region10: #{cbow_forward.2} parent=1 // pred_check
      _
    $region11: #{cbow_forward.2} parent=1 // pred_check_branch
      %26 = sbr.rel target = $region13
    $region12: #{cbow_forward.2} parent=1 // pred_region
      %27 = sst [smem:[#allocation8]] [#allocation7]
      %28 = sst [smem:[#allocation9]] [#allocation6]
    $region13: #{cbow_forward.2} parent=1 // pred_fallthru
      _
    %30 = shalt.err (0)
    %s32 = sshll.u32 [#allocation2], 4
    %s33 = int_to_ptr.vmem [resolvable:$true] %s32
    %35 = dma.hbm_to_vmem [thread:$0]  %s24, 16, %s33, [#allocation3]
    %s36 = sld [smem:[#allocation4 + $0x1]]
    %s37 = smul.addr %s36, 16
    %s38 = scalar_lea.hbm %s1, %s37
    %s39 = scalar_lea.vmem [#allocation2], 1
    %s40 = scalar_lea.sflag [#allocation3], 1
    // Predicated region
    $region14: #{cbow_forward.2} parent=1 // pred_check
      _
    $region15: #{cbow_forward.2} parent=1 // pred_check_branch
      %42 = sbr.rel target = $region17
    $region16: #{cbow_forward.2} parent=1 // pred_region
      %43 = sst [smem:[#allocation8]] [#allocation11]
      %44 = sst [smem:[#allocation9]] [#allocation10]
    $region17: #{cbow_forward.2} parent=1 // pred_fallthru
      _
    %46 = shalt.err (0)
    %s48 = sshll.u32 %s39, 4
    %s49 = int_to_ptr.vmem [resolvable:$true] %s48
    %51 = dma.hbm_to_vmem [thread:$0]  %s38, 16, %s49, %s40
    %s52 = sld [smem:[#allocation4 + $0x2]]
    %s53 = smul.addr %s52, 16
    %s54 = scalar_lea.hbm %s1, %s53
    %s55 = scalar_lea.vmem [#allocation2], 2
    %s56 = scalar_lea.sflag [#allocation3], 2
    // Predicated region
    $region18: #{cbow_forward.2} parent=1 // pred_check
      _
    $region19: #{cbow_forward.2} parent=1 // pred_check_branch
      %58 = sbr.rel target = $region21
    $region20: #{cbow_forward.2} parent=1 // pred_region
      %59 = sst [smem:[#allocation8]] [#allocation13]
      %60 = sst [smem:[#allocation9]] [#allocation12]
    $region21: #{cbow_forward.2} parent=1 // pred_fallthru
      _
    %62 = shalt.err (0)
    %s64 = sshll.u32 %s55, 4
    %s65 = int_to_ptr.vmem [resolvable:$true] %s64
    %67 = dma.hbm_to_vmem [thread:$0]  %s54, 16, %s65, %s56
    %s68 = sld [smem:[#allocation4 + $0x3]]
    %s69 = smul.addr %s68, 16
    %s70 = scalar_lea.hbm %s1, %s69
    %s71 = scalar_lea.vmem [#allocation2], 3
    %s72 = scalar_lea.sflag [#allocation3], 3
    // Predicated region
    $region22: #{cbow_forward.2} parent=1 // pred_check
      _
    $region23: #{cbow_forward.2} parent=1 // pred_check_branch
      %74 = sbr.rel target = $region25
    $region24: #{cbow_forward.2} parent=1 // pred_region
      %75 = sst [smem:[#allocation8]] [#allocation15]
      %76 = sst [smem:[#allocation9]] [#allocation14]
    $region25: #{cbow_forward.2} parent=1 // pred_fallthru
      _
    %78 = shalt.err (0)
    %s80 = sshll.u32 %s71, 4
    %s81 = int_to_ptr.vmem [resolvable:$true] %s80
    %83 = dma.hbm_to_vmem [thread:$0]  %s70, 16, %s81, %s72
    %s84 = sld [smem:[#allocation4 + $0x4]]
    %s85 = smul.addr %s84, 16
    %s86 = scalar_lea.hbm %s1, %s85
    %s87 = scalar_lea.vmem [#allocation2], 4
    %s88 = scalar_lea.sflag [#allocation3], 4
    // Predicated region
    $region26: #{cbow_forward.2} parent=1 // pred_check
      _
    $region27: #{cbow_forward.2} parent=1 // pred_check_branch
      %90 = sbr.rel target = $region29
    $region28: #{cbow_forward.2} parent=1 // pred_region
      %91 = sst [smem:[#allocation8]] [#allocation17]
      %92 = sst [smem:[#allocation9]] [#allocation16]
    $region29: #{cbow_forward.2} parent=1 // pred_fallthru
      _
    %94 = shalt.err (0)
    %s96 = sshll.u32 %s87, 4
    %s97 = int_to_ptr.vmem [resolvable:$true] %s96
    %99 = dma.hbm_to_vmem [thread:$0]  %s86, 16, %s97, %s88
    %s100 = sld [smem:[#allocation4 + $0x5]]
    %s101 = smul.addr %s100, 16
    %s102 = scalar_lea.hbm %s1, %s101
    %s103 = scalar_lea.vmem [#allocation2], 5
    %s104 = scalar_lea.sflag [#allocation3], 5
    // Predicated region
    $region30: #{cbow_forward.2} parent=1 // pred_check
      _
    $region31: #{cbow_forward.2} parent=1 // pred_check_branch
      %106 = sbr.rel target = $region33
    $region32: #{cbow_forward.2} parent=1 // pred_region
      %107 = sst [smem:[#allocation8]] [#allocation19]
      %108 = sst [smem:[#allocation9]] [#allocation18]
    $region33: #{cbow_forward.2} parent=1 // pred_fallthru
      _
    %110 = shalt.err (0)
    %s112 = sshll.u32 %s103, 4
    %s113 = int_to_ptr.vmem [resolvable:$true] %s112
    %115 = dma.hbm_to_vmem [thread:$0]  %s102, 16, %s113, %s104
    %s116 = sld [smem:[#allocation4 + $0x6]]
    %s117 = smul.addr %s116, 16
    %s118 = scalar_lea.hbm %s1, %s117
    %s119 = scalar_lea.vmem [#allocation2], 6
    %s120 = scalar_lea.sflag [#allocation3], 6
    // Predicated region
    $region34: #{cbow_forward.2} parent=1 // pred_check
      _
    $region35: #{cbow_forward.2} parent=1 // pred_check_branch
      %122 = sbr.rel target = $region37
    $region36: #{cbow_forward.2} parent=1 // pred_region
      %123 = sst [smem:[#allocation8]] [#allocation21]
      %124 = sst [smem:[#allocation9]] [#allocation20]
    $region37: #{cbow_forward.2} parent=1 // pred_fallthru
      _
    %126 = shalt.err (0)
    %s128 = sshll.u32 %s119, 4
    %s129 = int_to_ptr.vmem [resolvable:$true] %s128
    %131 = dma.hbm_to_vmem [thread:$0]  %s118, 16, %s129, %s120
    %s132 = sld [smem:[#allocation4 + $0x7]]
    %s133 = smul.addr %s132, 16
    %s134 = scalar_lea.hbm %s1, %s133
    %s135 = scalar_lea.vmem [#allocation2], 7
    %s136 = scalar_lea.sflag [#allocation3], 7
    // Predicated region
    $region38: #{cbow_forward.2} parent=1 // pred_check
      _
    $region39: #{cbow_forward.2} parent=1 // pred_check_branch
      %138 = sbr.rel target = $region41
    $region40: #{cbow_forward.2} parent=1 // pred_region
      %139 = sst [smem:[#allocation8]] [#allocation23]
      %140 = sst [smem:[#allocation9]] [#allocation22]
    $region41: #{cbow_forward.2} parent=1 // pred_fallthru
      _
    %142 = shalt.err (0)
    %s144 = sshll.u32 %s135, 4
    %s145 = int_to_ptr.vmem [resolvable:$true] %s144
    %147 = dma.hbm_to_vmem [thread:$0]  %s134, 16, %s145, %s136
    %s148 = smul.u32 1, 1
    %s149 = sshll.u32 %s148, 4
    %150 = dma.done [#allocation3], %s149
    %s151 = sshll.u32 %s148, 4
    %152 = dma.done %s40, %s151
    %s153 = sshll.u32 %s148, 4
    %154 = dma.done %s56, %s153
    %s155 = sshll.u32 %s148, 4
    %156 = dma.done %s72, %s155
    %s157 = sshll.u32 %s148, 4
    %158 = dma.done %s88, %s157
    %s159 = sshll.u32 %s148, 4
    %160 = dma.done %s104, %s159
    %s161 = sshll.u32 %s148, 4
    %162 = dma.done %s120, %s161
    %s163 = sshll.u32 %s148, 4
    %164 = dma.done %s136, %s163
    %v165 = vld [vmem:[#allocation2] sm:$0xff]
    %v166 = vrot.slane %v165, 4
    %v167 = vadd.f32 %v165, %v166
    %v168 = vrot.slane %v167, 2
    %v169 = vadd.f32 %v167, %v168
    %v170 = vrot.slane %v169, 1
    %v171 = vadd.f32 %v169, %v170
    %172 = vst [vmem:[%s2] sm:$0x1] %v171
    // Predicated region
    $region42: #{cbow_forward.2} parent=1 // pred_check
      _
    $region43: #{cbow_forward.2} parent=1 // pred_check_branch
      %174 = sbr.rel (0) target = $region45
    $region44: #{cbow_forward.2} parent=1 // pred_region
      _
    $region45: #{cbow_forward.2} parent=1 // pred_fallthru
      _
    // Predicated region
    $region46: #{cbow_forward.2} parent=1 // pred_check
      _
    $region47: #{cbow_forward.2} parent=1 // pred_check_branch
      %176 = sbr.rel (0) target = $region49
    $region48: #{cbow_forward.2} parent=1 // pred_region
      _
    $region49: #{cbow_forward.2} parent=1 // pred_fallthru
      _
    %177 = vsyncpa [#allocation5], 1
  %178 = vsyncmov [#allocation3]
  %s179 = vpop.sfrf %178
  %p180 = scmp.eq.s32.totalorder %s179, 0
  %p181 = pneg %p180
  %183 = shalt.err (%p181)
  %s184 = scalar_lea.sflag [#allocation3], 1
  %185 = vsyncmov %s184
  %s186 = vpop.sfrf %185
  %p187 = scmp.eq.s32.totalorder %s186, 0
  %p188 = pneg %p187
  %190 = shalt.err (%p188)
  %s191 = scalar_lea.sflag [#allocation3], 2
  %192 = vsyncmov %s191
  %s193 = vpop.sfrf %192
  %p194 = scmp.eq.s32.totalorder %s193, 0
  %p195 = pneg %p194
  %197 = shalt.err (%p195)
  %s198 = scalar_lea.sflag [#allocation3], 3
  %199 = vsyncmov %s198
  %s200 = vpop.sfrf %199
  %p201 = scmp.eq.s32.totalorder %s200, 0
  %p202 = pneg %p201
  %204 = shalt.err (%p202)
  %s205 = scalar_lea.sflag [#allocation3], 4
  %206 = vsyncmov %s205
  %s207 = vpop.sfrf %206
  %p208 = scmp.eq.s32.totalorder %s207, 0
  %p209 = pneg %p208
  %211 = shalt.err (%p209)
  %s212 = scalar_lea.sflag [#allocation3], 5
  %213 = vsyncmov %s212
  %s214 = vpop.sfrf %213
  %p215 = scmp.eq.s32.totalorder %s214, 0
  %p216 = pneg %p215
  %218 = shalt.err (%p216)
  %s219 = scalar_lea.sflag [#allocation3], 6
  %220 = vsyncmov %s219
  %s221 = vpop.sfrf %220
  %p222 = scmp.eq.s32.totalorder %s221, 0
  %p223 = pneg %p222
  %225 = shalt.err (%p223)
  %s226 = scalar_lea.sflag [#allocation3], 7
  %227 = vsyncmov %s226
  %s228 = vpop.sfrf %227
  %p229 = scmp.eq.s32.totalorder %s228, 0
  %p230 = pneg %p229
  %232 = shalt.err (%p230)

// kernel: cbow_forward.3
$region0: #{cbow_forward.3}
  #allocation0 [shape = 'u32[]', space=smem, size = 0x4, offset = 0x4, fixed_abs, tag = 'smem constant byte address 0x4 - core index']
  #allocation1 [shape = 'u32[144,128]{1,0:T(1,128)}', space=vmem, size = 0x12000, scoped, tag = 'internal scratch']
  %s0 = inlined_call_operand.vmem [shape: f32[1,128], index: 0, kind: input, shape index: {}]
  %s1 = inlined_call_operand.vmem [shape: f32[128,1024], index: 1, kind: input, shape index: {}]
  %s2 = inlined_call_operand.vmem [shape: f32[1,1024], index: 2, kind: input, shape index: {}]
  %s3 = inlined_call_operand.hbm [shape: f32[1,1024], index: 3, kind: output, shape index: {}]
  %s4 = sld [smem:[#allocation0]]
  $region68: #{cbow_forward.3} parent=0
    _
  %s6 = ssub.s32 1, %s4
  %s7 = scalar_select 0, %s6, %s4
  $region1: #{cbow_forward.3} parent=0
    #allocation2 [shape = 'u8[524288]{0}', space=vmem, size = 0x80000, scoped, tag = 'input window, operand 1']
    #allocation3 [shape = 'u8[4096]{0}', space=vmem, size = 0x1000, scoped, tag = 'output window, operand 0']
    #allocation4 [shape = 's32[2]{0}', space=sflag, size = 0x8, scoped, tag = 'scoped memory for cbow_forward.3']
    %8 = vsyncpa [#allocation4], 0
    %s9 = scalar_lea.sflag [#allocation4], 1
    %10 = vsyncpa %s9, 0
    loop: start=0, step=1, limit=4
    $region2: #{cbow_forward.3} parent=1 // loop_pre_header
      _
    $region3: #{cbow_forward.3} parent=1 // loop_header
      %s12 = sphi 0, %s16
      %p13 = scmp.ge.s32.totalorder %s12, 4
      %s20 = sphi 0, %s20
      %s22 = sphi 0, %s20
      %s23 = sphi 0, %s22
      %s37 = sphi 0, %s23
      %s43 = sphi 0, %s45
      %s46 = sphi 0, %s43
      %s47 = sphi 0, %s46
      %s63 = sphi 0, %s47
      %s69 = sphi 0, %s71
      %s72 = sphi 0, %s69
      %s73 = sphi 0, %s72
      %s89 = sphi 0, %s73
      %s95 = sphi 0, %s97
      %s98 = sphi 0, %s95
      %s99 = sphi 0, %s98
      %s115 = sphi 0, %s99
    $region4: #{cbow_forward.3} parent=1 // loop_header_branch
      %15 = sbr.rel (%p13) target = $region8
    $region5: #{cbow_forward.3} parent=1 // loop_body
      %s17 = ssub.s32 %s12, 1
      %s18 = ssub.s32 %s12, 2
      %s19 = sadd.s32 %s12, 1
      %s21 = sadd.s32 %s20, 1
      %p24 = scmp.eq.s32.totalorder %s12, 1
      %p25 = scmp.ne.s32.totalorder %s20, %s22
      %p26 = scmp.eq.s32.totalorder %s12, 0
      %p27 = por %p25, %p26
      %p28 = scmp.ne.s32.totalorder %s20, %s22
      %p29 = scmp.eq.s32.totalorder %s17, 1
      %p30 = por %p28, %p29
      %p31 = scmp.ne.s32.totalorder %s22, %s23
      %p32 = scmp.eq.s32.totalorder %s17, 0
      %p33 = por %p31, %p32
      %p34 = scmp.ne.s32.totalorder %s22, %s23
      %p35 = scmp.eq.s32.totalorder %s18, 1
      %p36 = por %p34, %p35
      %p38 = scmp.ne.s32.totalorder %s23, %s37
      %p39 = scmp.eq.s32.totalorder %s18, 0
      %p40 = por %p38, %p39
      %s41 = ssub.s32 %s12, %s19
      %p42 = scmp.eq.s32.totalorder %s41, 0
      %s44 = sadd.s32 %s43, 1
      %s45 = scalar_select %p42, %s43, %s44
      %p48 = pneg %p42
      %p49 = scmp.eq.s32.totalorder %s12, 1
      %p50 = por %p48, %p49
      %p51 = scmp.ne.s32.totalorder %s43, %s46
      %p52 = scmp.eq.s32.totalorder %s12, 0
      %p53 = por %p51, %p52
      %p54 = scmp.ne.s32.totalorder %s43, %s46
      %p55 = scmp.eq.s32.totalorder %s17, 1
      %p56 = por %p54, %p55
      %p57 = scmp.ne.s32.totalorder %s46, %s47
      %p58 = scmp.eq.s32.totalorder %s17, 0
      %p59 = por %p57, %p58
      %p60 = scmp.ne.s32.totalorder %s46, %s47
      %p61 = scmp.eq.s32.totalorder %s18, 1
      %p62 = por %p60, %p61
      %p64 = scmp.ne.s32.totalorder %s47, %s63
      %p65 = scmp.eq.s32.totalorder %s18, 0
      %p66 = por %p64, %p65
      %s67 = ssub.s32 %s12, %s19
      %p68 = scmp.eq.s32.totalorder %s67, 0
      %s70 = sadd.s32 %s69, 1
      %s71 = scalar_select %p68, %s69, %s70
      %p74 = pneg %p68
      %p75 = scmp.eq.s32.totalorder %s12, 1
      %p76 = por %p74, %p75
      %p77 = scmp.ne.s32.totalorder %s69, %s72
      %p78 = scmp.eq.s32.totalorder %s12, 0
      %p79 = por %p77, %p78
      %p80 = scmp.ne.s32.totalorder %s69, %s72
      %p81 = scmp.eq.s32.totalorder %s17, 1
      %p82 = por %p80, %p81
      %p83 = scmp.ne.s32.totalorder %s72, %s73
      %p84 = scmp.eq.s32.totalorder %s17, 0
      %p85 = por %p83, %p84
      %p86 = scmp.ne.s32.totalorder %s72, %s73
      %p87 = scmp.eq.s32.totalorder %s18, 1
      %p88 = por %p86, %p87
      %p90 = scmp.ne.s32.totalorder %s73, %s89
      %p91 = scmp.eq.s32.totalorder %s18, 0
      %p92 = por %p90, %p91
      %s93 = ssub.s32 %s12, %s19
      %p94 = scmp.eq.s32.totalorder %s93, 0
      %s96 = sadd.s32 %s95, 1
      %s97 = scalar_select %p94, %s95, %s96
      %p100 = pneg %p94
      %p101 = scmp.eq.s32.totalorder %s12, 1
      %p102 = por %p100, %p101
      %p103 = scmp.ne.s32.totalorder %s95, %s98
      %p104 = scmp.eq.s32.totalorder %s12, 0
      %p105 = por %p103, %p104
      %p106 = scmp.ne.s32.totalorder %s95, %s98
      %p107 = scmp.eq.s32.totalorder %s17, 1
      %p108 = por %p106, %p107
      %p109 = scmp.ne.s32.totalorder %s98, %s99
      %p110 = scmp.eq.s32.totalorder %s17, 0
      %p111 = por %p109, %p110
      %p112 = scmp.ne.s32.totalorder %s98, %s99
      %p113 = scmp.eq.s32.totalorder %s18, 1
      %p114 = por %p112, %p113
      %p116 = scmp.ne.s32.totalorder %s99, %s115
      %p117 = scmp.eq.s32.totalorder %s18, 0
      %p118 = por %p116, %p117
      %p119 = scmp.le.s32.totalorder 1, %s12
      %p120 = scmp.lt.s32.totalorder %s12, 3
      %p121 = pnand %p119, %p120
      %p122 = pneg %p121
      // Predicated region
      $region9: #{cbow_forward.3} parent=5 // pred_check
        _
      $region10: #{cbow_forward.3} parent=5 // pred_check_branch
        %124 = sbr.rel (%p121) target = $region12
      $region11: #{cbow_forward.3} parent=5 // pred_region
        %s125 = ssub.s32 %s12, 1
        // Predicated region
        $region13: #{cbow_forward.3} parent=11 // pred_check
          %p126 = pneg %p33
        $region14: #{cbow_forward.3} parent=11 // pred_check_branch
          %128 = sbr.rel (%p126) target = $region16
        $region15: #{cbow_forward.3} parent=11 // pred_region
          _
        $region16: #{cbow_forward.3} parent=11 // pred_fallthru
          _
      $region12: #{cbow_forward.3} parent=5 // pred_fallthru
        _
      %p129 = scmp.lt.s32.totalorder %s12, 2
      // Predicated region
      $region17: #{cbow_forward.3} parent=5 // pred_check
        %p130 = pneg %p129
      $region18: #{cbow_forward.3} parent=5 // pred_check_branch
        %132 = sbr.rel (%p130) target = $region20
      $region19: #{cbow_forward.3} parent=5 // pred_region
        // Predicated region
        $region21: #{cbow_forward.3} parent=19 // pred_check
          %p133 = pneg %p53
        $region22: #{cbow_forward.3} parent=19 // pred_check_branch
          %135 = sbr.rel (%p133) target = $region24
        $region23: #{cbow_forward.3} parent=19 // pred_region
          %s136 = sand.u32 %s43, 1
          %s137 = sand.u32 %s43, 1
          %s138 = smul.addr %s137, 512
          %s139 = scalar_lea.vmem [#allocation2], %s138
          %s140 = smul.u32 4, %s12
          %s141 = smul.addr %s140, 8
          %s142 = scalar_lea.vmem %s1, %s141
          // Predicated region
          $region25: #{cbow_forward.3} parent=23 // pred_check
            _
          $region26: #{cbow_forward.3} parent=23 // pred_check_branch
            %144 = sbr.rel (0) target = $region28
          $region27: #{cbow_forward.3} parent=23 // pred_region
            // Predicated region
            $region29: #{cbow_forward.3} parent=27 // pred_check
              _
            $region30: #{cbow_forward.3} parent=27 // pred_check_branch
              %146 = sbr.rel (0) target = $region32
            $region31: #{cbow_forward.3} parent=27 // pred_region
              loop: start=0, step=1, limit=1
              $region33: #{cbow_forward.3} parent=31 // loop_pre_header
                _
              $region34: #{cbow_forward.3} parent=31 // loop_header
                %s148 = sphi 0, %s152
                %p149 = scmp.ge.s32.totalorder %s148, 1
                %s153 = sphi %s142, %s142
                %s154 = sphi %s139, %s139
              $region35: #{cbow_forward.3} parent=31 // loop_header_branch
                %151 = sbr.rel (%p149) target = $region39
              $region36: #{cbow_forward.3} parent=31 // loop_body
                %v155 = vld [vmem:[%s153] sm:$0xff]
                %156 = vst [vmem:[%s154] sm:$0xff] %v155
                %v157 = vld [vmem:[%s153 + $0x8] sm:$0xff]
                %158 = vst [vmem:[%s154 + $0x8] sm:$0xff] %v157
                %v159 = vld [vmem:[%s153 + $0x10] sm:$0xff]
                %160 = vst [vmem:[%s154 + $0x10] sm:$0xff] %v159
                %v161 = vld [vmem:[%s153 + $0x18] sm:$0xff]
                %162 = vst [vmem:[%s154 + $0x18] sm:$0xff] %v161
                %v163 = vld [vmem:[%s153 + $0x40] sm:$0xff]
                %164 = vst [vmem:[%s154 + $0x20] sm:$0xff] %v163
                %v165 = vld [vmem:[%s153 + $0x48] sm:$0xff]
                %166 = vst [vmem:[%s154 + $0x28] sm:$0xff] %v165
                %v167 = vld [vmem:[%s153 + $0x50] sm:$0xff]
                %168 = vst [vmem:[%s154 + $0x30] sm:$0xff] %v167
                %v169 = vld [vmem:[%s153 + $0x58] sm:$0xff]
                %170 = vst [vmem:[%s154 + $0x38] sm:$0xff] %v169
                %v171 = vld [vmem:[%s153 + $0x80] sm:$0xff]
                %172 = vst [vmem:[%s154 + $0x40] sm:$0xff] %v171
                %v173 = vld [vmem:[%s153 + $0x88] sm:$0xff]
                %174 = vst [vmem:[%s154 + $0x48] sm:$0xff] %v173
                %v175 = vld [vmem:[%s153 + $0x90] sm:$0xff]
                %176 = vst [vmem:[%s154 + $0x50] sm:$0xff] %v175
                %v177 = vld [vmem:[%s153 + $0x98] sm:$0xff]
                %178 = vst [vmem:[%s154 + $0x58] sm:$0xff] %v177
                %v179 = vld [vmem:[%s153 + $0xc0] sm:$0xff]
                %180 = vst [vmem:[%s154 + $0x60] sm:$0xff] %v179
                %v181 = vld [vmem:[%s153 + $0xc8] sm:$0xff]
                %182 = vst [vmem:[%s154 + $0x68] sm:$0xff] %v181
                %v183 = vld [vmem:[%s153 + $0xd0] sm:$0xff]
                %184 = vst [vmem:[%s154 + $0x70] sm:$0xff] %v183
                %v185 = vld [vmem:[%s153 + $0xd8] sm:$0xff]
                %186 = vst [vmem:[%s154 + $0x78] sm:$0xff] %v185
                %v187 = vld [vmem:[%s153 + $0x100] sm:$0xff]
                %188 = vst [vmem:[%s154 + $0x80] sm:$0xff] %v187
                %v189 = vld [vmem:[%s153 + $0x108] sm:$0xff]
                %190 = vst [vmem:[%s154 + $0x88] sm:$0xff] %v189
                %v191 = vld [vmem:[%s153 + $0x110] sm:$0xff]
                %192 = vst [vmem:[%s154 + $0x90] sm:$0xff] %v191
                %v193 = vld [vmem:[%s153 + $0x118] sm:$0xff]
                %194 = vst [vmem:[%s154 + $0x98] sm:$0xff] %v193
                %v195 = vld [vmem:[%s153 + $0x140] sm:$0xff]
                %196 = vst [vmem:[%s154 + $0xa0] sm:$0xff] %v195
                %v197 = vld [vmem:[%s153 + $0x148] sm:$0xff]
                %198 = vst [vmem:[%s154 + $0xa8] sm:$0xff] %v197
                %v199 = vld [vmem:[%s153 + $0x150] sm:$0xff]
                %200 = vst [vmem:[%s154 + $0xb0] sm:$0xff] %v199
                %v201 = vld [vmem:[%s153 + $0x158] sm:$0xff]
                %202 = vst [vmem:[%s154 + $0xb8] sm:$0xff] %v201
                %v203 = vld [vmem:[%s153 + $0x180] sm:$0xff]
                %204 = vst [vmem:[%s154 + $0xc0] sm:$0xff] %v203
                %v205 = vld [vmem:[%s153 + $0x188] sm:$0xff]
                %206 = vst [vmem:[%s154 + $0xc8] sm:$0xff] %v205
                %v207 = vld [vmem:[%s153 + $0x190] sm:$0xff]
                %208 = vst [vmem:[%s154 + $0xd0] sm:$0xff] %v207
                %v209 = vld [vmem:[%s153 + $0x198] sm:$0xff]
                %210 = vst [vmem:[%s154 + $0xd8] sm:$0xff] %v209
                %v211 = vld [vmem:[%s153 + $0x1c0] sm:$0xff]
                %212 = vst [vmem:[%s154 + $0xe0] sm:$0xff] %v211
                %v213 = vld [vmem:[%s153 + $0x1c8] sm:$0xff]
                %214 = vst [vmem:[%s154 + $0xe8] sm:$0xff] %v213
                %v215 = vld [vmem:[%s153 + $0x1d0] sm:$0xff]
                %216 = vst [vmem:[%s154 + $0xf0] sm:$0xff] %v215
                %v217 = vld [vmem:[%s153 + $0x1d8] sm:$0xff]
                %218 = vst [vmem:[%s154 + $0xf8] sm:$0xff] %v217
                %v219 = vld [vmem:[%s153 + $0x200] sm:$0xff]
                %220 = vst [vmem:[%s154 + $0x100] sm:$0xff] %v219
                %v221 = vld [vmem:[%s153 + $0x208] sm:$0xff]
                %222 = vst [vmem:[%s154 + $0x108] sm:$0xff] %v221
                %v223 = vld [vmem:[%s153 + $0x210] sm:$0xff]
                %224 = vst [vmem:[%s154 + $0x110] sm:$0xff] %v223
                %v225 = vld [vmem:[%s153 + $0x218] sm:$0xff]
                %226 = vst [vmem:[%s154 + $0x118] sm:$0xff] %v225
                %v227 = vld [vmem:[%s153 + $0x240] sm:$0xff]
                %228 = vst [vmem:[%s154 + $0x120] sm:$0xff] %v227
                %v229 = vld [vmem:[%s153 + $0x248] sm:$0xff]
                %230 = vst [vmem:[%s154 + $0x128] sm:$0xff] %v229
                %v231 = vld [vmem:[%s153 + $0x250] sm:$0xff]
                %232 = vst [vmem:[%s154 + $0x130] sm:$0xff] %v231
                %v233 = vld [vmem:[%s153 + $0x258] sm:$0xff]
                %234 = vst [vmem:[%s154 + $0x138] sm:$0xff] %v233
                %v235 = vld [vmem:[%s153 + $0x280] sm:$0xff]
                %236 = vst [vmem:[%s154 + $0x140] sm:$0xff] %v235
                %v237 = vld [vmem:[%s153 + $0x288] sm:$0xff]
                %238 = vst [vmem:[%s154 + $0x148] sm:$0xff] %v237
                %v239 = vld [vmem:[%s153 + $0x290] sm:$0xff]
                %240 = vst [vmem:[%s154 + $0x150] sm:$0xff] %v239
                %v241 = vld [vmem:[%s153 + $0x298] sm:$0xff]
                %242 = vst [vmem:[%s154 + $0x158] sm:$0xff] %v241
                %v243 = vld [vmem:[%s153 + $0x2c0] sm:$0xff]
                %244 = vst [vmem:[%s154 + $0x160] sm:$0xff] %v243
                %v245 = vld [vmem:[%s153 + $0x2c8] sm:$0xff]
                %246 = vst [vmem:[%s154 + $0x168] sm:$0xff] %v245
                %v247 = vld [vmem:[%s153 + $0x2d0] sm:$0xff]
                %248 = vst [vmem:[%s154 + $0x170] sm:$0xff] %v247
                %v249 = vld [vmem:[%s153 + $0x2d8] sm:$0xff]
                %250 = vst [vmem:[%s154 + $0x178] sm:$0xff] %v249
                %v251 = vld [vmem:[%s153 + $0x300] sm:$0xff]
                %252 = vst [vmem:[%s154 + $0x180] sm:$0xff] %v251
                %v253 = vld [vmem:[%s153 + $0x308] sm:$0xff]
                %254 = vst [vmem:[%s154 + $0x188] sm:$0xff] %v253
                %v255 = vld [vmem:[%s153 + $0x310] sm:$0xff]
                %256 = vst [vmem:[%s154 + $0x190] sm:$0xff] %v255
                %v257 = vld [vmem:[%s153 + $0x318] sm:$0xff]
                %258 = vst [vmem:[%s154 + $0x198] sm:$0xff] %v257
                %v259 = vld [vmem:[%s153 + $0x340] sm:$0xff]
                %260 = vst [vmem:[%s154 + $0x1a0] sm:$0xff] %v259
                %v261 = vld [vmem:[%s153 + $0x348] sm:$0xff]
                %262 = vst [vmem:[%s154 + $0x1a8] sm:$0xff] %v261
                %v263 = vld [vmem:[%s153 + $0x350] sm:$0xff]
                %264 = vst [vmem:[%s154 + $0x1b0] sm:$0xff] %v263
                %v265 = vld [vmem:[%s153 + $0x358] sm:$0xff]
                %266 = vst [vmem:[%s154 + $0x1b8] sm:$0xff] %v265
                %v267 = vld [vmem:[%s153 + $0x380] sm:$0xff]
                %268 = vst [vmem:[%s154 + $0x1c0] sm:$0xff] %v267
                %v269 = vld [vmem:[%s153 + $0x388] sm:$0xff]
                %270 = vst [vmem:[%s154 + $0x1c8] sm:$0xff] %v269
                %v271 = vld [vmem:[%s153 + $0x390] sm:$0xff]
                %272 = vst [vmem:[%s154 + $0x1d0] sm:$0xff] %v271
                %v273 = vld [vmem:[%s153 + $0x398] sm:$0xff]
                %274 = vst [vmem:[%s154 + $0x1d8] sm:$0xff] %v273
                %v275 = vld [vmem:[%s153 + $0x3c0] sm:$0xff]
                %276 = vst [vmem:[%s154 + $0x1e0] sm:$0xff] %v275
                %v277 = vld [vmem:[%s153 + $0x3c8] sm:$0xff]
                %278 = vst [vmem:[%s154 + $0x1e8] sm:$0xff] %v277
                %v279 = vld [vmem:[%s153 + $0x3d0] sm:$0xff]
                %280 = vst [vmem:[%s154 + $0x1f0] sm:$0xff] %v279
                %v281 = vld [vmem:[%s153 + $0x3d8] sm:$0xff]
                %282 = vst [vmem:[%s154 + $0x1f8] sm:$0xff] %v281
              $region37: #{cbow_forward.3} parent=31 // loop_footer
                %s152 = sadd.s32 1, %s148
              $region38: #{cbow_forward.3} parent=31 // loop_footer_branch
                %147 = sbr.rel target = $region34
              $region39: #{cbow_forward.3} parent=31 // loop_exit
                _
            $region32: #{cbow_forward.3} parent=27 // pred_fallthru
              _
            // Predicated region
            $region40: #{cbow_forward.3} parent=27 // pred_check
              _
            $region41: #{cbow_forward.3} parent=27 // pred_check_branch
              %284 = sbr.rel target = $region43
            $region42: #{cbow_forward.3} parent=27 // pred_region
              _
            $region43: #{cbow_forward.3} parent=27 // pred_fallthru
              _
          $region28: #{cbow_forward.3} parent=23 // pred_fallthru
            _
          %285 = vnop
        $region24: #{cbow_forward.3} parent=19 // pred_fallthru
          _
        // Predicated region
        $region44: #{cbow_forward.3} parent=19 // pred_check
          %p286 = pneg %p79
        $region45: #{cbow_forward.3} parent=19 // pred_check_branch
          %288 = sbr.rel (%p286) target = $region47
        $region46: #{cbow_forward.3} parent=19 // pred_region
          %s289 = smul.u32 4, %s12
          %p290 = scmp.lt.s32.totalorder %s289, 7
          %s291 = scalar_select %p290, %s289, 7
          %s292 = scalar_lea.vmem %s2, %s291
          %s293 = smul.u32 4, %s12
        $region47: #{cbow_forward.3} parent=19 // pred_fallthru
          _
      $region20: #{cbow_forward.3} parent=5 // pred_fallthru
        _
      %p294 = scmp.le.s32.totalorder 1, %s12
      %p295 = scmp.lt.s32.totalorder %s12, 3
      %p296 = pnand %p294, %p295
      %p297 = pneg %p296
      // Predicated region
      $region48: #{cbow_forward.3} parent=5 // pred_check
        _
      $region49: #{cbow_forward.3} parent=5 // pred_check_branch
        %299 = sbr.rel (%p296) target = $region51
      $region50: #{cbow_forward.3} parent=5 // pred_region
        %s300 = ssub.s32 %s12, 1
        %s301 = sand.u32 %s46, 1
        %s302 = sand.u32 %s46, 1
        %s303 = smul.addr %s302, 512
        %s304 = scalar_lea.vmem [#allocation2], %s303
        // Predicated region
        $region52: #{cbow_forward.3} parent=50 // pred_check
          %p305 = pneg %p59
        $region53: #{cbow_forward.3} parent=50 // pred_check_branch
          %307 = sbr.rel (%p305) target = $region55
        $region54: #{cbow_forward.3} parent=50 // pred_region
          _
        $region55: #{cbow_forward.3} parent=50 // pred_fallthru
          _
        %p308 = pneg %p33
        %p309 = pneg %p30
        %s310 = sand.u32 %s46, 1
        %s311 = sand.u32 %s46, 1
        %s312 = smul.addr %s311, 512
        %s313 = scalar_lea.vmem [#allocation2], %s312
        %p314 = pneg %p59
        %p315 = pneg %p56
        %s316 = smul.u32 4, %s17
        %p317 = scmp.lt.s32.totalorder %s316, 7
        %s318 = scalar_select %p317, %s316, 7
        %s319 = scalar_lea.vmem %s2, %s318
        %p320 = pneg %p85
        %p321 = pneg %p82
        %p322 = pneg %p111
        %p323 = pneg %p108
        %s324 = sand.u32 %s98, 1
        %s325 = scalar_lea.sflag [#allocation4], %s324
        %s326 = sand.u32 %s98, 1
        %s327 = smul.addr %s326, 4
        %s328 = scalar_lea.vmem [#allocation3], %s327
        %s329 = smul.u32 4, %s17
        %s330 = smul.u32 4, %s17
        %p331 = scmp.lt.s32.totalorder %s330, 7
        %s332 = scalar_select %p331, %s330, 7
        %s333 = scalar_lea.vmem %s2, %s332
        %s334 = smul.u32 4, %s17
        %s335 = smul.u32 4, %s17
        %v336 = vld [vmem:[%s0] sm:$0x1]
        %v337 = vld [vmem:[%s304] sm:$0xff]
        %v338 = vld [vmem:[%s304 + $0x8] sm:$0xff]
        %v339 = vld [vmem:[%s304 + $0x10] sm:$0xff]
        %v340 = vld [vmem:[%s304 + $0x18] sm:$0xff]
        %v341 = vld [vmem:[%s304 + $0x20] sm:$0xff]
        %v342 = vld [vmem:[%s304 + $0x28] sm:$0xff]
        %v343 = vld [vmem:[%s304 + $0x30] sm:$0xff]
        %v344 = vld [vmem:[%s304 + $0x38] sm:$0xff]
        %v345 = vld [vmem:[%s304 + $0x40] sm:$0xff]
        %v346 = vld [vmem:[%s304 + $0x48] sm:$0xff]
        %v347 = vld [vmem:[%s304 + $0x50] sm:$0xff]
        %v348 = vld [vmem:[%s304 + $0x58] sm:$0xff]
        %v349 = vld [vmem:[%s304 + $0x60] sm:$0xff]
        %v350 = vld [vmem:[%s304 + $0x68] sm:$0xff]
        %v351 = vld [vmem:[%s304 + $0x70] sm:$0xff]
        %v352 = vld [vmem:[%s304 + $0x78] sm:$0xff]
        %v353 = vld [vmem:[%s304 + $0x80] sm:$0xff]
        %v354 = vld [vmem:[%s304 + $0x88] sm:$0xff]
        %v355 = vld [vmem:[%s304 + $0x90] sm:$0xff]
        %v356 = vld [vmem:[%s304 + $0x98] sm:$0xff]
        %v357 = vld [vmem:[%s304 + $0xa0] sm:$0xff]
        %v358 = vld [vmem:[%s304 + $0xa8] sm:$0xff]
        %v359 = vld [vmem:[%s304 + $0xb0] sm:$0xff]
        %v360 = vld [vmem:[%s304 + $0xb8] sm:$0xff]
        %v361 = vld [vmem:[%s304 + $0xc0] sm:$0xff]
        %v362 = vld [vmem:[%s304 + $0xc8] sm:$0xff]
        %v363 = vld [vmem:[%s304 + $0xd0] sm:$0xff]
        %v364 = vld [vmem:[%s304 + $0xd8] sm:$0xff]
        %v365 = vld [vmem:[%s304 + $0xe0] sm:$0xff]
        %v366 = vld [vmem:[%s304 + $0xe8] sm:$0xff]
        %v367 = vld [vmem:[%s304 + $0xf0] sm:$0xff]
        %v368 = vld [vmem:[%s304 + $0xf8] sm:$0xff]
        %v369 = vld [vmem:[%s304 + $0x100] sm:$0xff]
        %v370 = vld [vmem:[%s304 + $0x108] sm:$0xff]
        %v371 = vld [vmem:[%s304 + $0x110] sm:$0xff]
        %v372 = vld [vmem:[%s304 + $0x118] sm:$0xff]
        %v373 = vld [vmem:[%s304 + $0x120] sm:$0xff]
        %v374 = vld [vmem:[%s304 + $0x128] sm:$0xff]
        %v375 = vld [vmem:[%s304 + $0x130] sm:$0xff]
        %v376 = vld [vmem:[%s304 + $0x138] sm:$0xff]
        %v377 = vld [vmem:[%s304 + $0x140] sm:$0xff]
        %v378 = vld [vmem:[%s304 + $0x148] sm:$0xff]
        %v379 = vld [vmem:[%s304 + $0x150] sm:$0xff]
        %v380 = vld [vmem:[%s304 + $0x158] sm:$0xff]
        %v381 = vld [vmem:[%s304 + $0x160] sm:$0xff]
        %v382 = vld [vmem:[%s304 + $0x168] sm:$0xff]
        %v383 = vld [vmem:[%s304 + $0x170] sm:$0xff]
        %v384 = vld [vmem:[%s304 + $0x178] sm:$0xff]
        %v385 = vld [vmem:[%s304 + $0x180] sm:$0xff]
        %v386 = vld [vmem:[%s304 + $0x188] sm:$0xff]
        %v387 = vld [vmem:[%s304 + $0x190] sm:$0xff]
        %v388 = vld [vmem:[%s304 + $0x198] sm:$0xff]
        %v389 = vld [vmem:[%s304 + $0x1a0] sm:$0xff]
        %v390 = vld [vmem:[%s304 + $0x1a8] sm:$0xff]
        %v391 = vld [vmem:[%s304 + $0x1b0] sm:$0xff]
        %v392 = vld [vmem:[%s304 + $0x1b8] sm:$0xff]
        %v393 = vld [vmem:[%s304 + $0x1c0] sm:$0xff]
        %v394 = vld [vmem:[%s304 + $0x1c8] sm:$0xff]
        %v395 = vld [vmem:[%s304 + $0x1d0] sm:$0xff]
        %v396 = vld [vmem:[%s304 + $0x1d8] sm:$0xff]
        %v397 = vld [vmem:[%s304 + $0x1e0] sm:$0xff]
        %v398 = vld [vmem:[%s304 + $0x1e8] sm:$0xff]
        %v399 = vld [vmem:[%s304 + $0x1f0] sm:$0xff]
        %v400 = vld [vmem:[%s304 + $0x1f8] sm:$0xff]
        %v401 = vld [vmem:[%s333] sm:$0xf]
        %v403 = vlaneseq
        %v404 = vshrl.u32 %v403, 7
        %v405 = vsub.s32 0, %v404
        %v406 = vrot.slane %v401, %v405
        %v407 = vlaneseq
        %v408 = vshrl.u32 %v407, 7
        %v409 = vsub.s32 1, %v408
        %v410 = vrot.slane %v401, %v409
        %v411 = vlaneseq
        %v412 = vshrl.u32 %v411, 7
        %v413 = vsub.s32 2, %v412
        %v414 = vrot.slane %v401, %v413
        %v415 = vlaneseq
        %v416 = vshrl.u32 %v415, 7
        %v417 = vsub.s32 3, %v416
        %v418 = vrot.slane %v401, %v417
        %423 = vmatprep.subr.mxu0 %v398
        %424 = vmatpush1.msra.mxu0 %v397
        %425 = vmatprep.subr.mxu0 %v394
        %426 = vmatpush1.msra.mxu0 %v393
        %427 = vmatprep.subr.mxu0 %v390
        %428 = vmatpush1.msra.mxu0 %v389
        %429 = vmatprep.subr.mxu0 %v386
        %430 = vmatpush1.msra.mxu0 %v385
        %431 = vmatprep.subr.mxu0 %v382
        %432 = vmatpush1.msra.mxu0 %v381
        %433 = vmatprep.subr.mxu0 %v378
        %434 = vmatpush1.msra.mxu0 %v377
        %435 = vmatprep.subr.mxu0 %v374
        %436 = vmatpush1.msra.mxu0 %v373
        %437 = vmatprep.subr.mxu0 %v370
        %438 = vmatpush1.msra.mxu0 %v369
        %439 = vmatprep.subr.mxu0 %v366
        %440 = vmatpush1.msra.mxu0 %v365
        %441 = vmatprep.subr.mxu0 %v362
        %442 = vmatpush1.msra.mxu0 %v361
        %443 = vmatprep.subr.mxu0 %v358
        %444 = vmatpush1.msra.mxu0 %v357
        %445 = vmatprep.subr.mxu0 %v354
        %446 = vmatpush1.msra.mxu0 %v353
        %447 = vmatprep.subr.mxu0 %v350
        %448 = vmatpush1.msra.mxu0 %v349
        %449 = vmatprep.subr.mxu0 %v346
        %450 = vmatpush1.msra.mxu0 %v345
        %451 = vmatprep.subr.mxu0 %v342
        %452 = vmatpush1.msra.mxu0 %v341
        %453 = vmatprep.subr.mxu0 %v338
        %454 = vmatpush1.msra.mxu0 %v337
        %455 = vmatprep.subr.mxu0 0.0
        %456 = vmatpush2.msra.mxu0 0.0
        %457 = vmatprep.subr.mxu0 0.0
        %458 = vmatpush2.msra.mxu0 0.0
        %459 = vmatprep.subr.mxu0 0.0
        %460 = vmatpush2.msra.mxu0 0.0
        %461 = vmatprep.subr.mxu0 0.0
        %462 = vmatpush2.msra.mxu0 0.0
        %463 = vmatprep.subr.mxu0 0.0
        %464 = vmatpush2.msra.mxu0 0.0
        %465 = vmatprep.subr.mxu0 0.0
        %466 = vmatpush2.msra.mxu0 0.0
        %467 = vmatprep.subr.mxu0 0.0
        %468 = vmatpush2.msra.mxu0 0.0
        %469 = vmatprep.subr.mxu0 0.0
        %470 = vmatpush2.msra.mxu0 0.0
        %471 = vmatprep.subr.mxu0 0.0
        %472 = vmatpush2.msra.mxu0 0.0
        %473 = vmatprep.subr.mxu0 0.0
        %474 = vmatpush2.msra.mxu0 0.0
        %475 = vmatprep.subr.mxu0 0.0
        %476 = vmatpush2.msra.mxu0 0.0
        %477 = vmatprep.subr.mxu0 0.0
        %478 = vmatpush2.msra.mxu0 0.0
        %479 = vmatprep.subr.mxu0 0.0
        %480 = vmatpush2.msra.mxu0 0.0
        %481 = vmatprep.subr.mxu0 0.0
        %482 = vmatpush2.msra.mxu0 0.0
        %483 = vmatprep.subr.mxu0 0.0
        %484 = vmatpush2.msra.mxu0 0.0
        %485 = vmatprep.subr.mxu0 0.0
        %486 = vmatpush2.msra.mxu0 0.0
        %487 = vmatprep.mubr.f32.mxu0 0.0
        %488 = vmatmul.mubr.f32.gmra.mxu0 %v336
        %v489 = vpop.f32.mrf.mxu0
        %v490 = vadd.f32 %v406, %v489
        %v491 = vpop.f32.mrf.mxu0
        %v492 = vadd.f32 %v410, %v491
        %493 = vdwg.mxu0
        %494 = vmatprep.subr.mxu0 %v400
        %495 = vmatpush1.msra.mxu0 %v399
        %496 = vmatprep.subr.mxu0 %v396
        %497 = vmatpush1.msra.mxu0 %v395
        %498 = vmatprep.subr.mxu0 %v392
        %499 = vmatpush1.msra.mxu0 %v391
        %500 = vmatprep.subr.mxu0 %v388
        %501 = vmatpush1.msra.mxu0 %v387
        %502 = vmatprep.subr.mxu0 %v384
        %503 = vmatpush1.msra.mxu0 %v383
        %504 = vmatprep.subr.mxu0 %v380
        %505 = vmatpush1.msra.mxu0 %v379
        %506 = vmatprep.subr.mxu0 %v376
        %507 = vmatpush1.msra.mxu0 %v375
        %508 = vmatprep.subr.mxu0 %v372
        %509 = vmatpush1.msra.mxu0 %v371
        %510 = vmatprep.subr.mxu0 %v368
        %511 = vmatpush1.msra.mxu0 %v367
        %512 = vmatprep.subr.mxu0 %v364
        %513 = vmatpush1.msra.mxu0 %v363
        %514 = vmatprep.subr.mxu0 %v360
        %515 = vmatpush1.msra.mxu0 %v359
        %516 = vmatprep.subr.mxu0 %v356
        %517 = vmatpush1.msra.mxu0 %v355
        %518 = vmatprep.subr.mxu0 %v352
        %519 = vmatpush1.msra.mxu0 %v351
        %520 = vmatprep.subr.mxu0 %v348
        %521 = vmatpush1.msra.mxu0 %v347
        %522 = vmatprep.subr.mxu0 %v344
        %523 = vmatpush1.msra.mxu0 %v343
        %524 = vmatprep.subr.mxu0 %v340
        %525 = vmatpush1.msra.mxu0 %v339
        %526 = vmatprep.subr.mxu0 0.0
        %527 = vmatpush2.msra.mxu0 0.0
        %528 = vmatprep.subr.mxu0 0.0
        %529 = vmatpush2.msra.mxu0 0.0
        %530 = vmatprep.subr.mxu0 0.0
        %531 = vmatpush2.msra.mxu0 0.0
        %532 = vmatprep.subr.mxu0 0.0
        %533 = vmatpush2.msra.mxu0 0.0
        %534 = vmatprep.subr.mxu0 0.0
        %535 = vmatpush2.msra.mxu0 0.0
        %536 = vmatprep.subr.mxu0 0.0
        %537 = vmatpush2.msra.mxu0 0.0
        %538 = vmatprep.subr.mxu0 0.0
        %539 = vmatpush2.msra.mxu0 0.0
        %540 = vmatprep.subr.mxu0 0.0
        %541 = vmatpush2.msra.mxu0 0.0
        %542 = vmatprep.subr.mxu0 0.0
        %543 = vmatpush2.msra.mxu0 0.0
        %544 = vmatprep.subr.mxu0 0.0
        %545 = vmatpush2.msra.mxu0 0.0
        %546 = vmatprep.subr.mxu0 0.0
        %547 = vmatpush2.msra.mxu0 0.0
        %548 = vmatprep.subr.mxu0 0.0
        %549 = vmatpush2.msra.mxu0 0.0
        %550 = vmatprep.subr.mxu0 0.0
        %551 = vmatpush2.msra.mxu0 0.0
        %552 = vmatprep.subr.mxu0 0.0
        %553 = vmatpush2.msra.mxu0 0.0
        %554 = vmatprep.subr.mxu0 0.0
        %555 = vmatpush2.msra.mxu0 0.0
        %556 = vmatprep.subr.mxu0 0.0
        %557 = vmatpush2.msra.mxu0 0.0
        %558 = vmatprep.mubr.f32.mxu0 0.0
        %559 = vmatmul.mubr.f32.gmra.mxu0 %v336
        %v560 = vpop.f32.mrf.mxu0
        %v561 = vadd.f32 %v414, %v560
        %v562 = vpop.f32.mrf.mxu0
        %v563 = vadd.f32 %v418, %v562
        %564 = vdwg.mxu0
        %v569 = vcombine.low %v490, %v492
        %v570 = vcombine.low %v561, %v563
        %v572 = vunpack.c.l.s4 1966171168
        %v573 = vunpack.c.0.s8 %v572
        %v574 = vlaneseq
        %v575 = vshrl.u32 %v574, 7
        %v576 = vsub.s32 %v573, %v575
        %v577 = vrot.slane %v569, %v576
        %v579 = vunpack.c.l.s4 1966171168
        %v580 = vunpack.c.0.s8 %v579
        %v581 = vlaneseq
        %v582 = vshrl.u32 %v581, 7
        %v583 = vsub.s32 %v580, %v582
        %v584 = vrot.slane %v570, %v583
        %v585 = vcombine.low %v577, %v584
        %v587 = vunpack.c.l.s4 1966171168
        %v588 = vunpack.c.0.s8 %v587
        %v589 = vlaneseq
        %v590 = vshrl.u32 %v589, 7
        %v591 = vsub.s32 %v588, %v590
        %v592 = vrot.slane %v585, %v591
        %v594 = vlaneseq
        %vm595 = vcmp.ge.s32.totalorder %v594, 0
        %vm596 = vcmp.lt.s32.totalorder %v594, 512
        %vm597 = vmand %vm595, %vm596
        %598 = vst.msk [vmem:[%s328] sm:$0xf] %vm597, %v592
        %s599 = sand.u32 %s98, 1
        %s600 = scalar_lea.sflag [#allocation4], %s599
        %s601 = sand.u32 %s98, 1
        %s602 = smul.addr %s601, 4
        %s603 = scalar_lea.vmem [#allocation3], %s602
        // Predicated region
        $region56: #{cbow_forward.3} parent=50 // pred_check
          %p604 = pneg %p108
        $region57: #{cbow_forward.3} parent=50 // pred_check_branch
          %606 = sbr.rel (%p604) target = $region59
        $region58: #{cbow_forward.3} parent=50 // pred_region
          %s607 = smul.u32 4, %s17
          %s609 = ssub.s32 64, 64
          %610 = vsyncadd %s600, %s609
          %s611 = smul.addr %s607, 16
          %s612 = scalar_lea.hbm %s3, %s611
          %s614 = sshll.u32 %s603, 4
          %s615 = int_to_ptr.vmem [resolvable:$true] %s614
          %617 = dma.vmem_to_hbm [thread:$0]  %s615, 64, %s612, %s600
        $region59: #{cbow_forward.3} parent=50 // pred_fallthru
          _
      $region51: #{cbow_forward.3} parent=5 // pred_fallthru
        _
      %p618 = scmp.le.s32.totalorder 2, %s12
      // Predicated region
      $region60: #{cbow_forward.3} parent=5 // pred_check
        %p619 = pneg %p618
      $region61: #{cbow_forward.3} parent=5 // pred_check_branch
        %621 = sbr.rel (%p619) target = $region63
      $region62: #{cbow_forward.3} parent=5 // pred_region
        %s622 = ssub.s32 %s12, 2
        // Predicated region
        $region64: #{cbow_forward.3} parent=62 // pred_check
          %p623 = pneg %p114
        $region65: #{cbow_forward.3} parent=62 // pred_check_branch
          %625 = sbr.rel (%p623) target = $region67
        $region66: #{cbow_forward.3} parent=62 // pred_region
          %s626 = sand.u32 %s99, 1
          %s627 = scalar_lea.sflag [#allocation4], %s626
          %s628 = sand.u32 %s99, 1
          %s629 = smul.addr %s628, 4
          %s630 = scalar_lea.vmem [#allocation3], %s629
          %631 = dma.done %s627, 64
        $region67: #{cbow_forward.3} parent=62 // pred_fallthru
          _
      $region63: #{cbow_forward.3} parent=5 // pred_fallthru
        _
    $region6: #{cbow_forward.3} parent=1 // loop_footer
      %s16 = sadd.s32 1, %s12
    $region7: #{cbow_forward.3} parent=1 // loop_footer_branch
      %11 = sbr.rel target = $region3
    $region8: #{cbow_forward.3} parent=1 // loop_exit
      _
    %632 = vsyncpa [#allocation4], 1
    %s633 = scalar_lea.sflag [#allocation4], 1
    %634 = vsyncpa %s633, 1

</llo_original>
